<compile_context>
chip_gen: v5e
topology: v5e:2x2
jax: 0.10.0
libtpu: 0.0.40
codegen_flags: <defaults>
</compile_context>

<pallas_src>
import jax
import jax.numpy as jnp
import numpy as np
from jax.experimental import pallas as pl
from jax.experimental.pallas import tpu as pltpu

_LANE = 128


def _encoder_base_kernel(src_ref, out_ref):
    # TODO(synk): EncoderBase.forward is abstract (raises NotImplementedError);
    # a concrete subclass would place its RNN/conv compute here.  The base
    # class defines no compute, so the kernel is a faithful identity on `src`.
    out_ref[...] = src_ref[...]


def _lane_dense_2d(total_elems):
    """Pick (rows, cols) with cols a large multiple of 128 when possible."""
    for cols in (2048, 1024, 512, 256, 128):
        if total_elems % cols == 0:
            return total_elems // cols, cols
    return None


def _sublane_granule(itemsize):
    """Packed sublane count: 8 for 32-bit, 16 for bf16, 32 for int8/fp8."""
    return max(8, (8 * 4) // max(1, itemsize))


def _row_tile(rows, cols, itemsize, target_bytes=4 << 20):
    """Rows per tile: ~target_bytes, granule-aligned, preferring an even divisor."""
    granule = _sublane_granule(itemsize)
    t = target_bytes // max(1, cols * itemsize)
    t = max(granule, (t // granule) * granule)
    if t >= rows:
        return rows
    # Prefer a tile that divides rows evenly -> no masked partial last tile.
    d = t
    while d >= granule:
        if rows % d == 0:
            return d
        d -= granule
    return t  # tolerate a ragged edge if no aligned divisor exists


def _pallas_identity_copy(x2d):
    rows, cols = x2d.shape
    itemsize = jnp.dtype(x2d.dtype).itemsize
    tile_rows = _row_tile(rows, cols, itemsize)  # ~4 MiB tiles
    grid = (pl.cdiv(rows, tile_rows),)
    return pl.pallas_call(
        _encoder_base_kernel,
        out_shape=jax.ShapeDtypeStruct((rows, cols), x2d.dtype),
        grid=grid,
        in_specs=[pl.BlockSpec((tile_rows, cols), lambda i: (i, 0))],
        out_specs=pl.BlockSpec((tile_rows, cols), lambda i: (i, 0)),
        # Pure memory traffic: read + write of the whole slab.
        cost_estimate=pl.CostEstimate(
            flops=0,
            transcendentals=0,
            bytes_accessed=2 * rows * cols * itemsize,
        ),
        compiler_params=pltpu.CompilerParams(
            dimension_semantics=("parallel",),
            # 2 (in) + 2 (out) double-buffered ~4 MiB tiles = ~16 MiB; 32 MiB
            # scoped limit leaves headroom and is legal on v5e/v6e/v7x.
            vmem_limit_bytes=32 << 20,
        ),
    )(x2d)


def encoder_base_forward(src, lengths=None, hidden=None, *, use_pallas_copy=False):
    """Pallas implementation of EncoderBase.forward's (abstract) contract.

    Args:
      src: jnp.ndarray of shape (T, B, H) (time-major seq2seq convention).
      lengths: optional (B,) int array — unused by the abstract base class.
      hidden: optional init hidden state — unused by the abstract base class.
      use_pallas_copy: if False (default), take the zero-cost fast path and
        return `src` directly; if True, route through the Pallas identity
        kernel (the slot where subclass compute would live).

    Returns:
      jnp.ndarray with the same shape/dtype as `src`.
    """
    del lengths, hidden  # legitimately unused by the abstract base class

    if not use_pallas_copy:
        # Fast path: the base class defines no compute, so the identity is a
        # no-op.  No kernel launch, no HBM traffic.
        return src

    orig_shape = src.shape
    total = src.size

    shaped = _lane_dense_2d(total)
    if shaped is not None:
        rows, cols = shaped
        out2d = _pallas_identity_copy(src.reshape(rows, cols))
        return out2d.reshape(orig_shape)

    # Fallback (size % 128 != 0): pad the flat view up to a lane-dense 512-wide
    # slab so every store in the kernel is an unmasked full-lane vst, then
    # slice the padding off.  Pad/slice are cheap XLA ops on a small remainder.
    cols = 512
    pad = (-total) % cols
    flat = jnp.pad(src.reshape(-1), (0, pad))
    rows = flat.size // cols
    out2d = _pallas_identity_copy(flat.reshape(rows, cols))
    return out2d.reshape(-1)[:total].reshape(orig_shape)


if __name__ == "__main__":
    key = jax.random.PRNGKey(0)
    k_src, k_odd = jax.random.split(key)

    # Small shapes consistent with a seq2seq encoder input: T=8, B=2, H=32.
    T, B, H = 8, 2, 32
    src = jax.random.normal(k_src, (T, B, H), dtype=jnp.float32)
    lengths = jnp.full((B,), T, dtype=jnp.int32)  # interface arg; unused by base

    src_host = np.asarray(jax.device_get(src))

    # 1) Pallas copy path (the kernel under test).
    out = encoder_base_forward(src, lengths=lengths, hidden=None, use_pallas_copy=True)
    out = jax.block_until_ready(out)
    assert out.shape == src.shape and out.dtype == src.dtype
    assert np.allclose(np.asarray(jax.device_get(out)), src_host)

    # 2) Fallback path (total elements not a multiple of 128).
    odd = jax.random.normal(k_odd, (3, 2, 5), dtype=jnp.float32)
    odd_host = np.asarray(jax.device_get(odd))
    out_odd = jax.block_until_ready(
        encoder_base_forward(odd, use_pallas_copy=True))
    assert out_odd.shape == odd.shape and out_odd.dtype == odd.dtype
    assert np.allclose(np.asarray(jax.device_get(out_odd)), odd_host)

    # 3) Fast path (default): returns src untouched, no kernel launch.
    out_fast = jax.block_until_ready(encoder_base_forward(src, lengths=lengths))
    assert np.allclose(np.asarray(jax.device_get(out_fast)), src_host)

    print("KERNEL_OK")
</pallas_src>

<mosaic_0001>
module attributes {stable_mosaic.version = 11 : i64} {
  func.func @_encoder_base_kernel(%arg0: i32, %arg1: memref<1x512xf32, #tpu.memory_space<vmem>>, %arg2: memref<1x512xf32, #tpu.memory_space<vmem>>) attributes {dimension_semantics = [#tpu.dimension_semantics<parallel>], iteration_bounds = array<i64: 1>, scalar_prefetch = 0 : i64, scratch_operands = 0 : i64, tpu.core_type = #tpu.core_type<tc>, window_params = [{transform_indices = @transform_0, window_bounds = array<i64: 1, 512>}, {transform_indices = @transform_1, window_bounds = array<i64: 1, 512>}]} {
    %c0 = arith.constant 0 : index
    %c0_0 = arith.constant 0 : index
    %0 = vector.load %arg1[%c0, %c0_0] : memref<1x512xf32, #tpu.memory_space<vmem>>, vector<1x512xf32>
    %c0_1 = arith.constant 0 : index
    %c0_2 = arith.constant 0 : index
    %1 = vector.load %arg2[%c0_1, %c0_2] : memref<1x512xf32, #tpu.memory_space<vmem>>, vector<1x512xf32>
    tpu.vector_store %arg2[%c0_1, %c0_2], %0 {strides = array<i32>} : memref<1x512xf32, #tpu.memory_space<vmem>>, vector<1x512xf32>,
    return
  }
  func.func @transform_0(%arg0: i32) -> (i32, i32) {
    %c0_i32 = arith.constant 0 : i32
    %c0_i32_0 = arith.constant 0 : i32
    return %arg0, %c0_i32 : i32, i32
  }
  func.func @transform_1(%arg0: i32) -> (i32, i32) {
    %c0_i32 = arith.constant 0 : i32
    %c0_i32_0 = arith.constant 0 : i32
    return %arg0, %c0_i32 : i32, i32
  }
}

</mosaic_0001>

<llo_original>
// kernel: tpu_custom_call.1
$region0: #{tpu_custom_call.1}
  #allocation0 [shape = 'u32[]', space=smem, size = 0x4, offset = 0x4, fixed_abs, tag = 'smem constant byte address 0x4 - core index']
  #allocation1 [shape = 'u32[72,128]{1,0:T(1,128)}', space=vmem, size = 0x9000, scoped, tag = 'internal scratch']
  %s0 = inlined_call_operand.hbm [shape: f32[1,512], index: 0, kind: input, shape index: {}]
  %s1 = inlined_call_operand.hbm [shape: f32[1,512], index: 1, kind: output, shape index: {}]
  %s2 = sld [smem:[#allocation0]]
  $region18: #{tpu_custom_call.1} parent=0
    _
  %s4 = ssub.s32 1, %s2
  %s5 = scalar_select 0, %s4, %s2
  $region1: #{tpu_custom_call.1} parent=0
    #allocation2 [shape = 'u8[2048]{0}', space=vmem, size = 0x800, scoped, tag = 'input window, operand 0, single buffered']
    #allocation3 [shape = 's32[1]{0}', space=sflag, size = 0x4, scoped, tag = 'scoped memory for tpu_custom_call.1']
    #allocation4 [shape = 's32[1]{0}', space=sflag, size = 0x4, scoped, tag = 'scoped memory for tpu_custom_call.1']
    #allocation5 [shape = 'u8[2048]{0}', space=vmem, size = 0x800, scoped, tag = 'output window, operand 0, single buffered']
    %6 = vsyncpa [#allocation3], 0
    %7 = vsyncpa [#allocation4], 0
    // Predicated region
    $region2: #{tpu_custom_call.1} parent=1 // pred_check
      _
    $region3: #{tpu_custom_call.1} parent=1 // pred_check_branch
      %9 = sbr.rel (0) target = $region5
    $region4: #{tpu_custom_call.1} parent=1 // pred_region
      %11 = vsyncadd [#allocation3], 0
      %s13 = sshll.u32 %s0, 4
      %s14 = int_to_ptr.hbm [resolvable:$true] %s13
      %s15 = sshll.u32 [#allocation2], 4
      %s16 = int_to_ptr.vmem [resolvable:$true] %s15
      %18 = dma.hbm_to_vmem [thread:$0]  %s14, 64, %s16, [#allocation3]
    $region5: #{tpu_custom_call.1} parent=1 // pred_fallthru
      _
    // Predicated region
    $region6: #{tpu_custom_call.1} parent=1 // pred_check
      _
    $region7: #{tpu_custom_call.1} parent=1 // pred_check_branch
      %20 = sbr.rel (0) target = $region9
    $region8: #{tpu_custom_call.1} parent=1 // pred_region
      %22 = dma.done [#allocation3], 64
    $region9: #{tpu_custom_call.1} parent=1 // pred_fallthru
      _
    %v23 = vld [vmem:[#allocation2] sm:$0xf]
    %v24 = vlaneseq
    %vm25 = vcmp.ge.s32.totalorder %v24, 0
    %vm26 = vcmp.lt.s32.totalorder %v24, 512
    %vm27 = vmand %vm25, %vm26
    %28 = vst.msk [vmem:[#allocation5] sm:$0xf] %vm27, %v23
    // Predicated region
    $region10: #{tpu_custom_call.1} parent=1 // pred_check
      _
    $region11: #{tpu_custom_call.1} parent=1 // pred_check_branch
      %30 = sbr.rel (0) target = $region13
    $region12: #{tpu_custom_call.1} parent=1 // pred_region
      %32 = vsyncadd [#allocation4], 0
      %s34 = sshll.u32 [#allocation5], 4
      %s35 = int_to_ptr.vmem [resolvable:$true] %s34
      %s36 = sshll.u32 %s1, 4
      %s37 = int_to_ptr.hbm [resolvable:$true] %s36
      %39 = dma.vmem_to_hbm [thread:$0]  %s35, 64, %s37, [#allocation4]
    $region13: #{tpu_custom_call.1} parent=1 // pred_fallthru
      _
    // Predicated region
    $region14: #{tpu_custom_call.1} parent=1 // pred_check
      _
    $region15: #{tpu_custom_call.1} parent=1 // pred_check_branch
      %41 = sbr.rel (0) target = $region17
    $region16: #{tpu_custom_call.1} parent=1 // pred_region
      %43 = dma.done [#allocation4], 64
    $region17: #{tpu_custom_call.1} parent=1 // pred_fallthru
      _
    %44 = vsyncpa [#allocation3], 1
    %45 = vsyncpa [#allocation4], 1

</llo_original>
